<compile_context>
chip_gen: v6e
topology: v6e:2x2x1
jax: 0.10.0
libtpu: 0.0.40
codegen_flags: <defaults>
</compile_context>

<pallas_src>
import math

import jax
import jax.numpy as jnp
from jax.experimental import pallas as pl
from jax.experimental.pallas import tpu as pltpu

_LANE = 128


def _round_up(x, m):
    return ((x + m - 1) // m) * m


def _cdiv(a, b):
    return (a + b - 1) // b


def _const_spec(shape, index_map):
    """BlockSpec for a grid-invariant operand: single-buffered (never re-fetched)."""
    try:
        return pl.BlockSpec(shape, index_map, pipeline_mode=pl.Buffered(1))
    except (TypeError, AttributeError):
        # Older jax without pipeline_mode / Buffered: fall back to default.
        return pl.BlockSpec(shape, index_map)


def _vmem_budget_bytes():
    """~80% of this generation's VMEM (v5e/v6e: 128 MiB, v7x: 64 MiB per TC)."""
    try:
        cap = int(pltpu.get_tpu_info().vmem_capacity_bytes)
    except Exception:
        cap = 64 * 2**20  # conservative fallback (v7x per-TensorCore size)
    return int(cap * 4 // 5)


# ----------------------------------------------------------------------------
# Kernels
# ----------------------------------------------------------------------------
def _classifier_kernel(x_ref, w1_ref, b1_ref, w2_ref, b2_ref, o_ref):
    # ff1: (Dropout = identity) -> Linear -> ReLU.  f32 MXU accumulation.
    h = jnp.dot(x_ref[...], w1_ref[...], preferred_element_type=jnp.float32)
    h = jnp.maximum(h + b1_ref[...], 0.0)
    # ff2: (Dropout = identity) -> Linear -> ReLU.
    y = jnp.dot(h.astype(w2_ref.dtype), w2_ref[...],
                preferred_element_type=jnp.float32)
    y = jnp.maximum(y + b2_ref[...], 0.0)
    o_ref[...] = y.astype(o_ref.dtype)


def _classifier_kernel_ktiled(x_ref, w1_ref, b1_ref, w2_ref, b2_ref, o_ref,
                              acc_ref):
    """K-tiled first matmul (w1 too big to keep resident); epilogue on last K step."""
    k = pl.program_id(1)

    @pl.when(k == 0)
    def _():
        acc_ref[...] = jnp.zeros_like(acc_ref)

    acc_ref[...] += jnp.dot(x_ref[...], w1_ref[...],
                            preferred_element_type=jnp.float32)

    @pl.when(k == pl.num_programs(1) - 1)
    def _():
        h = jnp.maximum(acc_ref[...] + b1_ref[...], 0.0)
        y = jnp.dot(h.astype(w2_ref.dtype), w2_ref[...],
                    preferred_element_type=jnp.float32)
        y = jnp.maximum(y + b2_ref[...], 0.0)
        o_ref[...] = y.astype(o_ref.dtype)


# ----------------------------------------------------------------------------
# Wrapper
# ----------------------------------------------------------------------------
def classifier_forward(x, w1, b1, w2, b2, *, tile_b=None, tile_k=None,
                       compute_dtype=None, pad_output_lanes=True,
                       keep_padded=False, force_k_tiling=False):
    """Fused 2-layer MLP (Linear+ReLU twice), dropout = identity (eval mode).

    x : (B, in_features)
    w1: (in_features, dff)         b1: (dff,) or (1, dff)
    w2: (dff, out_features)        b2: (out_features,) or (1, out_features)
    compute_dtype: optionally jnp.bfloat16 to feed bf16 to the MXU
                   (accumulation and bias/ReLU epilogue stay f32).
    pad_output_lanes: pad out_features to a 128-lane multiple for lane-dense
                      stores (padding sliced off on return unless keep_padded).
    """
    B, in_features = x.shape
    dff = w1.shape[1]
    out_features = w2.shape[1]
    out_dtype = x.dtype

    # Accept 1-D (PyTorch-exported) or (1, d) biases; keep epilogue in f32.
    b1 = jnp.asarray(b1).reshape(1, dff).astype(jnp.float32)
    b2 = jnp.asarray(b2).reshape(1, out_features).astype(jnp.float32)

    # ---- output-feature padding (lane-dense stores) --------------------------
    if pad_output_lanes and out_features % _LANE != 0:
        out_pad = _round_up(out_features, _LANE)
        w2 = jnp.pad(w2, ((0, 0), (0, out_pad - out_features)))
        b2 = jnp.pad(b2, ((0, 0), (0, out_pad - out_features)))
    else:
        out_pad = out_features

    # ---- optional bf16 MXU inputs --------------------------------------------
    if compute_dtype is not None:
        x = x.astype(compute_dtype)
        w1 = w1.astype(compute_dtype)
        w2 = w2.astype(compute_dtype)
    act_dtype = x.dtype
    sublane = 16 if act_dtype == jnp.bfloat16 else 8
    act_bytes = jnp.dtype(act_dtype).itemsize
    w_bytes = jnp.dtype(w1.dtype).itemsize
    out_bytes = jnp.dtype(out_dtype).itemsize

    budget = _vmem_budget_bytes()

    # Resident-weight footprint (weights/biases single-buffered via Buffered(1)).
    w_resident = (in_features * dff * w_bytes
                  + dff * out_pad * w_bytes
                  + (dff + out_pad) * 4)
    use_k_tiling = force_k_tiling or (w_resident > budget * 2 // 3)

    # Per-batch-row activation footprint: x (2x), out (2x), h/acc intermediate.
    row_bytes = 2 * in_features * act_bytes + 2 * out_pad * out_bytes + dff * 4

    # ---- batch tile -----------------------------------------------------------
    if tile_b is None:
        target_steps = 8  # >= 4 grid steps per TensorCore on v7x megacore
        if B >= 2048:
            tile_b = max(256, min(1024, _round_up(_cdiv(B, target_steps), 256)))
        elif B > 4 * sublane:
            tile_b = _round_up(_cdiv(B, 4), sublane)
        else:
            tile_b = _round_up(max(B, 1), sublane)
    tile_b = _round_up(tile_b, sublane)
    act_budget = max(budget - (0 if use_k_tiling else w_resident), budget // 4)
    max_rows = max(sublane, (act_budget // max(row_bytes, 1)) // sublane * sublane)
    tile_b = max(sublane, min(tile_b, max_rows))

    # ---- pad batch so ragged sizes don't break tiling -------------------------
    B_pad = _round_up(B, tile_b)
    if B_pad != B:
        x = jnp.pad(x, ((0, B_pad - B), (0, 0)))

    if not use_k_tiling:
        # ---- single-pass path: all weights resident in VMEM -------------------
        vmem_est = tile_b * row_bytes + w_resident
        vmem_limit = int(min(max(vmem_est * 3 // 2, 16 * 2**20), budget))
        cost = pl.CostEstimate(
            flops=2 * B_pad * (in_features * dff + dff * out_pad),
            transcendentals=0,
            bytes_accessed=(B_pad * in_features * act_bytes
                            + in_features * dff * w_bytes
                            + dff * out_pad * w_bytes
                            + B_pad * out_pad * out_bytes),
        )
        out = pl.pallas_call(
            _classifier_kernel,
            out_shape=jax.ShapeDtypeStruct((B_pad, out_pad), out_dtype),
            grid_spec=pltpu.PrefetchScalarGridSpec(
                num_scalar_prefetch=0,
                grid=(B_pad // tile_b,),
                in_specs=[
                    pl.BlockSpec((tile_b, in_features), lambda i: (i, 0)),
                    _const_spec((in_features, dff), lambda i: (0, 0)),
                    _const_spec((1, dff), lambda i: (0, 0)),
                    _const_spec((dff, out_pad), lambda i: (0, 0)),
                    _const_spec((1, out_pad), lambda i: (0, 0)),
                ],
                out_specs=pl.BlockSpec((tile_b, out_pad), lambda i: (i, 0)),
            ),
            compiler_params=pltpu.CompilerParams(
                dimension_semantics=("parallel",),
                vmem_limit_bytes=vmem_limit,
            ),
            cost_estimate=cost,
        )(x, w1, b1, w2, b2)
    else:
        # ---- K-tiled fallback: w1 streamed over in_features --------------------
        if tile_k is None:
            fixed = (dff * out_pad * w_bytes + (dff + out_pad) * 4
                     + 2 * tile_b * out_pad * out_bytes + tile_b * dff * 4)
            per_k_col = 2 * tile_b * act_bytes + 2 * dff * w_bytes
            avail = budget * 3 // 4 - fixed
            if avail > per_k_col * _LANE:
                tile_k = max(_LANE, (avail // per_k_col) // _LANE * _LANE)
            else:
                tile_k = _LANE
        tile_k = min(_round_up(tile_k, _LANE), _round_up(in_features, _LANE))
        K_pad = _round_up(in_features, tile_k)
        if K_pad != in_features:
            x = jnp.pad(x, ((0, 0), (0, K_pad - in_features)))
            w1 = jnp.pad(w1, ((0, K_pad - in_features), (0, 0)))

        vmem_est = (2 * tile_b * tile_k * act_bytes
                    + 2 * tile_k * dff * w_bytes
                    + dff * out_pad * w_bytes
                    + (dff + out_pad) * 4
                    + 2 * tile_b * out_pad * out_bytes
                    + tile_b * dff * 4)
        vmem_limit = int(min(max(vmem_est * 3 // 2, 16 * 2**20), budget))
        cost = pl.CostEstimate(
            flops=2 * B_pad * (K_pad * dff + dff * out_pad),
            transcendentals=0,
            bytes_accessed=(B_pad * K_pad * act_bytes
                            + K_pad * dff * w_bytes
                            + dff * out_pad * w_bytes
                            + B_pad * out_pad * out_bytes),
        )
        out = pl.pallas_call(
            _classifier_kernel_ktiled,
            out_shape=jax.ShapeDtypeStruct((B_pad, out_pad), out_dtype),
            grid_spec=pltpu.PrefetchScalarGridSpec(
                num_scalar_prefetch=0,
                grid=(B_pad // tile_b, K_pad // tile_k),
                in_specs=[
                    pl.BlockSpec((tile_b, tile_k), lambda i, k: (i, k)),
                    pl.BlockSpec((tile_k, dff), lambda i, k: (k, 0)),
                    _const_spec((1, dff), lambda i, k: (0, 0)),
                    _const_spec((dff, out_pad), lambda i, k: (0, 0)),
                    _const_spec((1, out_pad), lambda i, k: (0, 0)),
                ],
                out_specs=pl.BlockSpec((tile_b, out_pad), lambda i, k: (i, 0)),
                scratch_shapes=[pltpu.VMEM((tile_b, dff), jnp.float32)],
            ),
            compiler_params=pltpu.CompilerParams(
                dimension_semantics=("parallel", "arbitrary"),
                vmem_limit_bytes=vmem_limit,
            ),
            cost_estimate=cost,
        )(x, w1, b1, w2, b2)

    if keep_padded:
        return out[:B]
    return out[:B, :out_features]


def reference_forward(x, w1, b1, w2, b2):
    h = jnp.maximum(x @ w1 + b1, 0.0)
    return jnp.maximum(h @ w2 + b2, 0.0)


if __name__ == "__main__":
    # Small shapes consistent with the module (in_features, dim_feedforward,
    # out_features); batch big enough that grid > 1.
    B, in_features, dff, out_features = 256, 256, 512, 7

    key = jax.random.PRNGKey(0)
    kx, k1, kb1, k2, kb2 = jax.random.split(key, 5)

    x = jax.random.normal(kx, (B, in_features), dtype=jnp.float32)
    # Deterministic parameter init (PyTorch-Linear-like uniform bounds), (in, out).
    bound1 = 1.0 / math.sqrt(in_features)
    w1 = jax.random.uniform(k1, (in_features, dff), jnp.float32, -bound1, bound1)
    b1 = jax.random.uniform(kb1, (dff,), jnp.float32, -bound1, bound1)
    bound2 = 1.0 / math.sqrt(dff)
    w2 = jax.random.uniform(k2, (dff, out_features), jnp.float32, -bound2, bound2)
    b2 = jax.random.uniform(kb2, (out_features,), jnp.float32, -bound2, bound2)

    ref = reference_forward(x, w1, b1.reshape(1, -1), w2, b2.reshape(1, -1))

    # 1) Default exact-f32 path (matches the module's eval() forward).
    out = jax.block_until_ready(classifier_forward(x, w1, b1, w2, b2))
    assert out.shape == (B, out_features)
    assert jnp.allclose(out, ref, atol=1e-5, rtol=1e-5)

    # 2) Ragged batch (not a multiple of the tile / sublane).
    out_r = jax.block_until_ready(classifier_forward(x[:133], w1, b1, w2, b2))
    assert out_r.shape == (133, out_features)
    assert jnp.allclose(out_r, ref[:133], atol=1e-5, rtol=1e-5)

    # 3) bf16 MXU-input fast path (f32 accumulation) — looser tolerance.
    out_bf = jax.block_until_ready(
        classifier_forward(x, w1, b1, w2, b2, compute_dtype=jnp.bfloat16))
    assert out_bf.shape == (B, out_features)
    assert jnp.allclose(out_bf, ref, atol=1e-1, rtol=5e-2)

    # 4) K-tiled large-weight fallback, forced at small shapes to validate it.
    out_kt = jax.block_until_ready(
        classifier_forward(x, w1, b1, w2, b2, force_k_tiling=True, tile_k=128))
    assert jnp.allclose(out_kt, ref, atol=1e-5, rtol=1e-5)

    # 5) Unpadded (masked-store) output path for the tiny out_features.
    out_np = jax.block_until_ready(
        classifier_forward(x, w1, b1, w2, b2, pad_output_lanes=False))
    assert jnp.allclose(out_np, ref, atol=1e-5, rtol=1e-5)

    print("KERNEL_OK")
</pallas_src>

<mosaic_0001>
module attributes {stable_mosaic.version = 11 : i64} {
  func.func @_classifier_kernel(%arg0: i32, %arg1: memref<64x256xf32, #tpu.memory_space<vmem>>, %arg2: memref<256x512xf32, #tpu.memory_space<vmem>>, %arg3: memref<1x512xf32, #tpu.memory_space<vmem>>, %arg4: memref<512x128xf32, #tpu.memory_space<vmem>>, %arg5: memref<1x128xf32, #tpu.memory_space<vmem>>, %arg6: memref<64x128xf32, #tpu.memory_space<vmem>>) attributes {dimension_semantics = [#tpu.dimension_semantics<parallel>], iteration_bounds = array<i64: 4>, scalar_prefetch = 0 : i64, scratch_operands = 0 : i64, tpu.core_type = #tpu.core_type<tc>, window_params = [{transform_indices = @transform_0, window_bounds = array<i64: 64, 256>}, {pipeline_mode = #tpu.pipeline_mode<synchronous>, transform_indices = @transform_1, window_bounds = array<i64: 256, 512>}, {pipeline_mode = #tpu.pipeline_mode<synchronous>, transform_indices = @transform_2, window_bounds = array<i64: 1, 512>}, {pipeline_mode = #tpu.pipeline_mode<synchronous>, transform_indices = @transform_3, window_bounds = array<i64: 512, 128>}, {pipeline_mode = #tpu.pipeline_mode<synchronous>, transform_indices = @transform_4, window_bounds = array<i64: 1, 128>}, {transform_indices = @transform_5, window_bounds = array<i64: 64, 128>}]} {
    %c0 = arith.constant 0 : index
    %c0_0 = arith.constant 0 : index
    %0 = vector.load %arg1[%c0, %c0_0] : memref<64x256xf32, #tpu.memory_space<vmem>>, vector<64x256xf32>
    %c0_1 = arith.constant 0 : index
    %c0_2 = arith.constant 0 : index
    %1 = vector.load %arg2[%c0_1, %c0_2] : memref<256x512xf32, #tpu.memory_space<vmem>>, vector<256x512xf32>
    %cst = arith.constant dense<0.000000e+00> : vector<64x512xf32>
    %2 = tpu.matmul %0, %1, %cst {dimension_numbers = #tpu.dot_dimension_numbers<[1], [0], [0], [1], [0, 0, 1, 1], [], []>} : vector<64x256xf32>, vector<256x512xf32>, vector<64x512xf32> -> vector<64x512xf32>
    %c0_3 = arith.constant 0 : index
    %c0_4 = arith.constant 0 : index
    %3 = vector.load %arg3[%c0_3, %c0_4] : memref<1x512xf32, #tpu.memory_space<vmem>>, vector<1x512xf32>
    %4 = vector.broadcast %3 : vector<1x512xf32> to vector<64x512xf32>
    %5 = arith.addf %2, %4 : vector<64x512xf32>
    %cst_5 = arith.constant 0.000000e+00 : f32
    %6 = vector.broadcast %cst_5 : f32 to vector<64x512xf32>
    %7 = arith.maximumf %5, %6 : vector<64x512xf32>
    %c0_6 = arith.constant 0 : index
    %c0_7 = arith.constant 0 : index
    %8 = vector.load %arg4[%c0_6, %c0_7] : memref<512x128xf32, #tpu.memory_space<vmem>>, vector<512x128xf32>
    %cst_8 = arith.constant dense<0.000000e+00> : vector<64x128xf32>
    %9 = tpu.matmul %7, %8, %cst_8 {dimension_numbers = #tpu.dot_dimension_numbers<[1], [0], [0], [1], [0, 0, 1, 1], [], []>} : vector<64x512xf32>, vector<512x128xf32>, vector<64x128xf32> -> vector<64x128xf32>
    %c0_9 = arith.constant 0 : index
    %c0_10 = arith.constant 0 : index
    %10 = vector.load %arg5[%c0_9, %c0_10] : memref<1x128xf32, #tpu.memory_space<vmem>>, vector<1x128xf32>
    %11 = vector.broadcast %10 : vector<1x128xf32> to vector<64x128xf32>
    %12 = arith.addf %9, %11 : vector<64x128xf32>
    %cst_11 = arith.constant 0.000000e+00 : f32
    %13 = vector.broadcast %cst_11 : f32 to vector<64x128xf32>
    %14 = arith.maximumf %12, %13 : vector<64x128xf32>
    %c0_12 = arith.constant 0 : index
    %c0_13 = arith.constant 0 : index
    %15 = vector.load %arg6[%c0_12, %c0_13] : memref<64x128xf32, #tpu.memory_space<vmem>>, vector<64x128xf32>
    tpu.vector_store %arg6[%c0_12, %c0_13], %14 {strides = array<i32>} : memref<64x128xf32, #tpu.memory_space<vmem>>, vector<64x128xf32>,
    return
  }
  func.func @transform_0(%arg0: i32) -> (i32, i32) {
    %c0_i32 = arith.constant 0 : i32
    %c0_i32_0 = arith.constant 0 : i32
    return %arg0, %c0_i32 : i32, i32
  }
  func.func @transform_1(%arg0: i32) -> (i32, i32) {
    %c0_i32 = arith.constant 0 : i32
    %c0_i32_0 = arith.constant 0 : i32
    %c0_i32_1 = arith.constant 0 : i32
    return %c0_i32, %c0_i32_0 : i32, i32
  }
  func.func @transform_2(%arg0: i32) -> (i32, i32) {
    %c0_i32 = arith.constant 0 : i32
    %c0_i32_0 = arith.constant 0 : i32
    %c0_i32_1 = arith.constant 0 : i32
    return %c0_i32, %c0_i32_0 : i32, i32
  }
  func.func @transform_3(%arg0: i32) -> (i32, i32) {
    %c0_i32 = arith.constant 0 : i32
    %c0_i32_0 = arith.constant 0 : i32
    %c0_i32_1 = arith.constant 0 : i32
    return %c0_i32, %c0_i32_0 : i32, i32
  }
  func.func @transform_4(%arg0: i32) -> (i32, i32) {
    %c0_i32 = arith.constant 0 : i32
    %c0_i32_0 = arith.constant 0 : i32
    %c0_i32_1 = arith.constant 0 : i32
    return %c0_i32, %c0_i32_0 : i32, i32
  }
  func.func @transform_5(%arg0: i32) -> (i32, i32) {
    %c0_i32 = arith.constant 0 : i32
    %c0_i32_0 = arith.constant 0 : i32
    return %arg0, %c0_i32 : i32, i32
  }
}

</mosaic_0001>

<llo_original>
// kernel: tpu_custom_call.1
$region0: #{tpu_custom_call.1}
  #allocation0 [shape = 'u32[]', space=smem, size = 0x4, offset = 0x4, fixed_abs, tag = 'smem constant byte address 0x4 - core index']
  #allocation1 [shape = 'u32[144,128]{1,0:T(1,128)}', space=vmem, size = 0x12000, scoped, tag = 'internal scratch']
  %s0 = inlined_call_operand.hbm [shape: f32[256,256], index: 0, kind: input, shape index: {}]
  %s1 = inlined_call_operand.hbm [shape: f32[256,512], index: 1, kind: input, shape index: {}]
  %s2 = inlined_call_operand.hbm [shape: f32[1,512], index: 2, kind: input, shape index: {}]
  %s3 = inlined_call_operand.hbm [shape: f32[512,128], index: 3, kind: input, shape index: {}]
  %s4 = inlined_call_operand.vmem [shape: f32[1,128], index: 4, kind: input, shape index: {}]
  %s5 = inlined_call_operand.hbm [shape: f32[256,128], index: 5, kind: output, shape index: {}]
  %s6 = sld [smem:[#allocation0]]
  $region69: #{tpu_custom_call.1} parent=0
    _
  %s8 = ssub.s32 1, %s6
  %s9 = scalar_select 0, %s8, %s6
  $region1: #{tpu_custom_call.1} parent=0
    #allocation2 [shape = 'u8[131072]{0}', space=vmem, size = 0x20000, scoped, tag = 'input window, operand 0']
    #allocation3 [shape = 's32[2]{0}', space=sflag, size = 0x8, scoped, tag = 'scoped memory for tpu_custom_call.1']
    #allocation4 [shape = 's32[2]{0}', space=sflag, size = 0x8, scoped, tag = 'scoped memory for tpu_custom_call.1']
    #allocation5 [shape = 'u8[524288]{0}', space=vmem, size = 0x80000, scoped, tag = 'input window, operand 1, single buffered']
    #allocation6 [shape = 's32[1]{0}', space=sflag, size = 0x4, scoped, tag = 'scoped memory for tpu_custom_call.1']
    #allocation7 [shape = 'u8[2048]{0}', space=vmem, size = 0x800, scoped, tag = 'input window, operand 2, single buffered']
    #allocation8 [shape = 'u8[262144]{0}', space=vmem, size = 0x40000, scoped, tag = 'input window, operand 3, single buffered']
    #allocation9 [shape = 's32[1]{0}', space=sflag, size = 0x4, scoped, tag = 'scoped memory for tpu_custom_call.1']
    #allocation10 [shape = 'u8[65536]{0}', space=vmem, size = 0x10000, scoped, tag = 'output window, operand 0']
    %10 = vsyncpa [#allocation3], 0
    %s11 = scalar_lea.sflag [#allocation3], 1
    %12 = vsyncpa %s11, 0
    %13 = vsyncpa [#allocation6], 0
    %14 = vsyncpa [#allocation9], 0
    %15 = vsyncpa [#allocation4], 0
    %s16 = scalar_lea.sflag [#allocation4], 1
    %17 = vsyncpa %s16, 0
    loop: start=0, step=1, limit=6
    $region2: #{tpu_custom_call.1} parent=1 // loop_pre_header
      _
    $region3: #{tpu_custom_call.1} parent=1 // loop_header
      %s19 = sphi 0, %s23
      %p20 = scmp.ge.s32.totalorder %s19, 6
      %s29 = sphi 0, %s31
      %s32 = sphi 0, %s29
      %s33 = sphi 0, %s32
      %s49 = sphi 0, %s33
      %s53 = sphi 0, %s53
      %s55 = sphi 0, %s53
      %s56 = sphi 0, %s55
      %s70 = sphi 0, %s56
      %s74 = sphi 0, %s74
      %s76 = sphi 0, %s74
      %s77 = sphi 0, %s76
      %s91 = sphi 0, %s77
      %s95 = sphi 0, %s95
      %s97 = sphi 0, %s95
      %s98 = sphi 0, %s97
      %s112 = sphi 0, %s98
      %s116 = sphi 0, %s116
      %s118 = sphi 0, %s116
      %s119 = sphi 0, %s118
      %s133 = sphi 0, %s119
      %s139 = sphi 0, %s141
      %s142 = sphi 0, %s139
      %s143 = sphi 0, %s142
      %s159 = sphi 0, %s143
    $region4: #{tpu_custom_call.1} parent=1 // loop_header_branch
      %22 = sbr.rel (%p20) target = $region8
    $region5: #{tpu_custom_call.1} parent=1 // loop_body
      %s24 = ssub.s32 %s19, 1
      %s25 = ssub.s32 %s19, 2
      %s26 = sadd.s32 %s19, 1
      %s27 = ssub.s32 %s19, %s26
      %p28 = scmp.eq.s32.totalorder %s27, 0
      %s30 = sadd.s32 %s29, 1
      %s31 = scalar_select %p28, %s29, %s30
      %p34 = pneg %p28
      %p35 = scmp.eq.s32.totalorder %s19, 3
      %p36 = por %p34, %p35
      %p37 = scmp.ne.s32.totalorder %s29, %s32
      %p38 = scmp.eq.s32.totalorder %s19, 0
      %p39 = por %p37, %p38
      %p40 = scmp.ne.s32.totalorder %s29, %s32
      %p41 = scmp.eq.s32.totalorder %s24, 3
      %p42 = por %p40, %p41
      %p43 = scmp.ne.s32.totalorder %s32, %s33
      %p44 = scmp.eq.s32.totalorder %s24, 0
      %p45 = por %p43, %p44
      %p46 = scmp.ne.s32.totalorder %s32, %s33
      %p47 = scmp.eq.s32.totalorder %s25, 3
      %p48 = por %p46, %p47
      %p50 = scmp.ne.s32.totalorder %s33, %s49
      %p51 = scmp.eq.s32.totalorder %s25, 0
      %p52 = por %p50, %p51
      %s54 = sadd.s32 %s53, 1
      %p57 = scmp.eq.s32.totalorder %s19, 3
      %p58 = scmp.ne.s32.totalorder %s53, %s55
      %p59 = scmp.eq.s32.totalorder %s19, 0
      %p60 = por %p58, %p59
      %p61 = scmp.ne.s32.totalorder %s53, %s55
      %p62 = scmp.eq.s32.totalorder %s24, 3
      %p63 = por %p61, %p62
      %p64 = scmp.ne.s32.totalorder %s55, %s56
      %p65 = scmp.eq.s32.totalorder %s24, 0
      %p66 = por %p64, %p65
      %p67 = scmp.ne.s32.totalorder %s55, %s56
      %p68 = scmp.eq.s32.totalorder %s25, 3
      %p69 = por %p67, %p68
      %p71 = scmp.ne.s32.totalorder %s56, %s70
      %p72 = scmp.eq.s32.totalorder %s25, 0
      %p73 = por %p71, %p72
      %s75 = sadd.s32 %s74, 1
      %p78 = scmp.eq.s32.totalorder %s19, 3
      %p79 = scmp.ne.s32.totalorder %s74, %s76
      %p80 = scmp.eq.s32.totalorder %s19, 0
      %p81 = por %p79, %p80
      %p82 = scmp.ne.s32.totalorder %s74, %s76
      %p83 = scmp.eq.s32.totalorder %s24, 3
      %p84 = por %p82, %p83
      %p85 = scmp.ne.s32.totalorder %s76, %s77
      %p86 = scmp.eq.s32.totalorder %s24, 0
      %p87 = por %p85, %p86
      %p88 = scmp.ne.s32.totalorder %s76, %s77
      %p89 = scmp.eq.s32.totalorder %s25, 3
      %p90 = por %p88, %p89
      %p92 = scmp.ne.s32.totalorder %s77, %s91
      %p93 = scmp.eq.s32.totalorder %s25, 0
      %p94 = por %p92, %p93
      %s96 = sadd.s32 %s95, 1
      %p99 = scmp.eq.s32.totalorder %s19, 3
      %p100 = scmp.ne.s32.totalorder %s95, %s97
      %p101 = scmp.eq.s32.totalorder %s19, 0
      %p102 = por %p100, %p101
      %p103 = scmp.ne.s32.totalorder %s95, %s97
      %p104 = scmp.eq.s32.totalorder %s24, 3
      %p105 = por %p103, %p104
      %p106 = scmp.ne.s32.totalorder %s97, %s98
      %p107 = scmp.eq.s32.totalorder %s24, 0
      %p108 = por %p106, %p107
      %p109 = scmp.ne.s32.totalorder %s97, %s98
      %p110 = scmp.eq.s32.totalorder %s25, 3
      %p111 = por %p109, %p110
      %p113 = scmp.ne.s32.totalorder %s98, %s112
      %p114 = scmp.eq.s32.totalorder %s25, 0
      %p115 = por %p113, %p114
      %s117 = sadd.s32 %s116, 1
      %p120 = scmp.eq.s32.totalorder %s19, 3
      %p121 = scmp.ne.s32.totalorder %s116, %s118
      %p122 = scmp.eq.s32.totalorder %s19, 0
      %p123 = por %p121, %p122
      %p124 = scmp.ne.s32.totalorder %s116, %s118
      %p125 = scmp.eq.s32.totalorder %s24, 3
      %p126 = por %p124, %p125
      %p127 = scmp.ne.s32.totalorder %s118, %s119
      %p128 = scmp.eq.s32.totalorder %s24, 0
      %p129 = por %p127, %p128
      %p130 = scmp.ne.s32.totalorder %s118, %s119
      %p131 = scmp.eq.s32.totalorder %s25, 3
      %p132 = por %p130, %p131
      %p134 = scmp.ne.s32.totalorder %s119, %s133
      %p135 = scmp.eq.s32.totalorder %s25, 0
      %p136 = por %p134, %p135
      %s137 = ssub.s32 %s19, %s26
      %p138 = scmp.eq.s32.totalorder %s137, 0
      %s140 = sadd.s32 %s139, 1
      %s141 = scalar_select %p138, %s139, %s140
      %p144 = pneg %p138
      %p145 = scmp.eq.s32.totalorder %s19, 3
      %p146 = por %p144, %p145
      %p147 = scmp.ne.s32.totalorder %s139, %s142
      %p148 = scmp.eq.s32.totalorder %s19, 0
      %p149 = por %p147, %p148
      %p150 = scmp.ne.s32.totalorder %s139, %s142
      %p151 = scmp.eq.s32.totalorder %s24, 3
      %p152 = por %p150, %p151
      %p153 = scmp.ne.s32.totalorder %s142, %s143
      %p154 = scmp.eq.s32.totalorder %s24, 0
      %p155 = por %p153, %p154
      %p156 = scmp.ne.s32.totalorder %s142, %s143
      %p157 = scmp.eq.s32.totalorder %s25, 3
      %p158 = por %p156, %p157
      %p160 = scmp.ne.s32.totalorder %s143, %s159
      %p161 = scmp.eq.s32.totalorder %s25, 0
      %p162 = por %p160, %p161
      %p163 = scmp.le.s32.totalorder 1, %s19
      %p164 = scmp.lt.s32.totalorder %s19, 5
      %p165 = pnand %p163, %p164
      %p166 = pneg %p165
      // Predicated region
      $region9: #{tpu_custom_call.1} parent=5 // pred_check
        _
      $region10: #{tpu_custom_call.1} parent=5 // pred_check_branch
        %168 = sbr.rel (%p165) target = $region12
      $region11: #{tpu_custom_call.1} parent=5 // pred_region
        %s169 = ssub.s32 %s19, 1
        // Predicated region
        $region13: #{tpu_custom_call.1} parent=11 // pred_check
          %p170 = pneg %p66
        $region14: #{tpu_custom_call.1} parent=11 // pred_check_branch
          %172 = sbr.rel (%p170) target = $region16
        $region15: #{tpu_custom_call.1} parent=11 // pred_region
          %s174 = ssub.s32 16384, 16384
          %175 = vsyncadd [#allocation6], %s174
          %s176 = sshll.u32 [#allocation5], 4
          %s177 = int_to_ptr.vmem [resolvable:$true] %s176
          %182 = dma.hbm_to_vmem [thread:$0]  %s1, 16384, %s177, [#allocation6], 512, 512, 32
        $region16: #{tpu_custom_call.1} parent=11 // pred_fallthru
          _
        // Predicated region
        $region17: #{tpu_custom_call.1} parent=11 // pred_check
          %p183 = pneg %p87
        $region18: #{tpu_custom_call.1} parent=11 // pred_check_branch
          %185 = sbr.rel (%p183) target = $region20
        $region19: #{tpu_custom_call.1} parent=11 // pred_region
          %s187 = ssub.s32 64, 64
          %188 = vsyncadd [#allocation6], %s187
          %s190 = sshll.u32 [#allocation7], 4
          %s191 = int_to_ptr.vmem [resolvable:$true] %s190
          %193 = dma.hbm_to_vmem [thread:$0]  %s2, 64, %s191, [#allocation6]
        $region20: #{tpu_custom_call.1} parent=11 // pred_fallthru
          _
        // Predicated region
        $region21: #{tpu_custom_call.1} parent=11 // pred_check
          %p194 = pneg %p108
        $region22: #{tpu_custom_call.1} parent=11 // pred_check_branch
          %196 = sbr.rel (%p194) target = $region24
        $region23: #{tpu_custom_call.1} parent=11 // pred_region
          %s198 = ssub.s32 8192, 8192
          %199 = vsyncadd [#allocation9], %s198
          %s200 = sshll.u32 [#allocation8], 4
          %s201 = int_to_ptr.vmem [resolvable:$true] %s200
          %206 = dma.hbm_to_vmem [thread:$0]  %s3, 8192, %s201, [#allocation9], 128, 128, 8
        $region24: #{tpu_custom_call.1} parent=11 // pred_fallthru
          _
        // Predicated region
        $region25: #{tpu_custom_call.1} parent=11 // pred_check
          %p207 = pneg %p129
        $region26: #{tpu_custom_call.1} parent=11 // pred_check_branch
          %209 = sbr.rel (%p207) target = $region28
        $region27: #{tpu_custom_call.1} parent=11 // pred_region
          _
        $region28: #{tpu_custom_call.1} parent=11 // pred_fallthru
          _
      $region12: #{tpu_custom_call.1} parent=5 // pred_fallthru
        _
      %p210 = scmp.lt.s32.totalorder %s19, 4
      // Predicated region
      $region29: #{tpu_custom_call.1} parent=5 // pred_check
        %p211 = pneg %p210
      $region30: #{tpu_custom_call.1} parent=5 // pred_check_branch
        %213 = sbr.rel (%p211) target = $region32
      $region31: #{tpu_custom_call.1} parent=5 // pred_region
        // Predicated region
        $region33: #{tpu_custom_call.1} parent=31 // pred_check
          %p214 = pneg %p39
        $region34: #{tpu_custom_call.1} parent=31 // pred_check_branch
          %216 = sbr.rel (%p214) target = $region36
        $region35: #{tpu_custom_call.1} parent=31 // pred_region
          %s217 = sand.u32 %s29, 1
          %s218 = scalar_lea.sflag [#allocation3], %s217
          %s219 = sand.u32 %s29, 1
          %s220 = smul.addr %s219, 128
          %s221 = scalar_lea.vmem [#allocation2], %s220
          %s222 = smul.u32 8, %s19
          %s224 = ssub.s32 2048, 2048
          %225 = vsyncadd %s218, %s224
          %s226 = smul.addr %s222, 2
          %s227 = smul.addr %s226, 128
          %s228 = scalar_lea.hbm %s0, %s227
          %s229 = sshll.u32 %s221, 4
          %s230 = int_to_ptr.vmem [resolvable:$true] %s229
          %235 = dma.hbm_to_vmem [thread:$0]  %s228, 2048, %s230, %s218, 256, 256, 16
        $region36: #{tpu_custom_call.1} parent=31 // pred_fallthru
          _
      $region32: #{tpu_custom_call.1} parent=5 // pred_fallthru
        _
      %p236 = scmp.le.s32.totalorder 1, %s19
      %p237 = scmp.lt.s32.totalorder %s19, 5
      %p238 = pnand %p236, %p237
      %p239 = pneg %p238
      // Predicated region
      $region37: #{tpu_custom_call.1} parent=5 // pred_check
        _
      $region38: #{tpu_custom_call.1} parent=5 // pred_check_branch
        %241 = sbr.rel (%p238) target = $region40
      $region39: #{tpu_custom_call.1} parent=5 // pred_region
        %s242 = ssub.s32 %s19, 1
        %s243 = sand.u32 %s32, 1
        %s244 = scalar_lea.sflag [#allocation3], %s243
        %s245 = sand.u32 %s32, 1
        %s246 = smul.addr %s245, 128
        %s247 = scalar_lea.vmem [#allocation2], %s246
        // Predicated region
        $region41: #{tpu_custom_call.1} parent=39 // pred_check
          %p248 = pneg %p45
        $region42: #{tpu_custom_call.1} parent=39 // pred_check_branch
          %250 = sbr.rel (%p248) target = $region44
        $region43: #{tpu_custom_call.1} parent=39 // pred_region
          %251 = dma.done %s244, 2048
        $region44: #{tpu_custom_call.1} parent=39 // pred_fallthru
          _
        // Predicated region
        $region45: #{tpu_custom_call.1} parent=39 // pred_check
          %p252 = pneg %p66
        $region46: #{tpu_custom_call.1} parent=39 // pred_check_branch
          %254 = sbr.rel (%p252) target = $region48
        $region47: #{tpu_custom_call.1} parent=39 // pred_region
          %255 = dma.done [#allocation6], 16384
        $region48: #{tpu_custom_call.1} parent=39 // pred_fallthru
          _
        // Predicated region
        $region49: #{tpu_custom_call.1} parent=39 // pred_check
          %p256 = pneg %p87
        $region50: #{tpu_custom_call.1} parent=39 // pred_check_branch
          %258 = sbr.rel (%p256) target = $region52
        $region51: #{tpu_custom_call.1} parent=39 // pred_region
          %259 = dma.done [#allocation6], 64
        $region52: #{tpu_custom_call.1} parent=39 // pred_fallthru
          _
        // Predicated region
        $region53: #{tpu_custom_call.1} parent=39 // pred_check
          %p260 = pneg %p108
        $region54: #{tpu_custom_call.1} parent=39 // pred_check_branch
          %262 = sbr.rel (%p260) target = $region56
        $region55: #{tpu_custom_call.1} parent=39 // pred_region
          %263 = dma.done [#allocation9], 8192
        $region56: #{tpu_custom_call.1} parent=39 // pred_fallthru
          _
        %s264 = sand.u32 %s32, 1
        %s265 = scalar_lea.sflag [#allocation3], %s264
        %s266 = sand.u32 %s32, 1
        %s267 = smul.addr %s266, 128
        %s268 = scalar_lea.vmem [#allocation2], %s267
        %p269 = pneg %p45
        %p270 = pneg %p42
        %p271 = pneg %p66
        %p272 = pneg %p63
        %p273 = pneg %p87
        %p274 = pneg %p84
        %p275 = pneg %p108
        %p276 = pneg %p105
        %p277 = pneg %p129
        %p278 = pneg %p126
        %p279 = pneg %p155
        %p280 = pneg %p152
        %s281 = sand.u32 %s142, 1
        %s282 = scalar_lea.sflag [#allocation4], %s281
        %s283 = sand.u32 %s142, 1
        %s284 = smul.addr %s283, 64
        %s285 = scalar_lea.vmem [#allocation10], %s284
        %s286 = smul.u32 8, %s24
        %s287 = smul.u32 8, %s24
        %v288 = vld [vmem:[%s247] sm:$0xff]
        %v289 = vld [vmem:[%s247 + $0x8] sm:$0xff]
        %v290 = vld [vmem:[%s247 + $0x10] sm:$0xff]
        %v291 = vld [vmem:[%s247 + $0x18] sm:$0xff]
        %v292 = vld [vmem:[%s247 + $0x20] sm:$0xff]
        %v293 = vld [vmem:[%s247 + $0x28] sm:$0xff]
        %v294 = vld [vmem:[%s247 + $0x30] sm:$0xff]
        %v295 = vld [vmem:[%s247 + $0x38] sm:$0xff]
        %v296 = vld [vmem:[%s247 + $0x40] sm:$0xff]
        %v297 = vld [vmem:[%s247 + $0x48] sm:$0xff]
        %v298 = vld [vmem:[%s247 + $0x50] sm:$0xff]
        %v299 = vld [vmem:[%s247 + $0x58] sm:$0xff]
        %v300 = vld [vmem:[%s247 + $0x60] sm:$0xff]
        %v301 = vld [vmem:[%s247 + $0x68] sm:$0xff]
        %v302 = vld [vmem:[%s247 + $0x70] sm:$0xff]
        %v303 = vld [vmem:[%s247 + $0x78] sm:$0xff]
        %v304 = vld [vmem:[#allocation5] sm:$0xff]
        %v305 = vld [vmem:[#allocation5 + $0x8] sm:$0xff]
        %v306 = vld [vmem:[#allocation5 + $0x10] sm:$0xff]
        %v307 = vld [vmem:[#allocation5 + $0x18] sm:$0xff]
        %v308 = vld [vmem:[#allocation5 + $0x20] sm:$0xff]
        %v309 = vld [vmem:[#allocation5 + $0x28] sm:$0xff]
        %v310 = vld [vmem:[#allocation5 + $0x30] sm:$0xff]
        %v311 = vld [vmem:[#allocation5 + $0x38] sm:$0xff]
        %v312 = vld [vmem:[#allocation5 + $0x40] sm:$0xff]
        %v313 = vld [vmem:[#allocation5 + $0x48] sm:$0xff]
        %v314 = vld [vmem:[#allocation5 + $0x50] sm:$0xff]
        %v315 = vld [vmem:[#allocation5 + $0x58] sm:$0xff]
        %v316 = vld [vmem:[#allocation5 + $0x60] sm:$0xff]
        %v317 = vld [vmem:[#allocation5 + $0x68] sm:$0xff]
        %v318 = vld [vmem:[#allocation5 + $0x70] sm:$0xff]
        %v319 = vld [vmem:[#allocation5 + $0x78] sm:$0xff]
        %v320 = vld [vmem:[#allocation5 + $0x80] sm:$0xff]
        %v321 = vld [vmem:[#allocation5 + $0x88] sm:$0xff]
        %v322 = vld [vmem:[#allocation5 + $0x90] sm:$0xff]
        %v323 = vld [vmem:[#allocation5 + $0x98] sm:$0xff]
        %v324 = vld [vmem:[#allocation5 + $0xa0] sm:$0xff]
        %v325 = vld [vmem:[#allocation5 + $0xa8] sm:$0xff]
        %v326 = vld [vmem:[#allocation5 + $0xb0] sm:$0xff]
        %v327 = vld [vmem:[#allocation5 + $0xb8] sm:$0xff]
        %v328 = vld [vmem:[#allocation5 + $0xc0] sm:$0xff]
        %v329 = vld [vmem:[#allocation5 + $0xc8] sm:$0xff]
        %v330 = vld [vmem:[#allocation5 + $0xd0] sm:$0xff]
        %v331 = vld [vmem:[#allocation5 + $0xd8] sm:$0xff]
        %v332 = vld [vmem:[#allocation5 + $0xe0] sm:$0xff]
        %v333 = vld [vmem:[#allocation5 + $0xe8] sm:$0xff]
        %v334 = vld [vmem:[#allocation5 + $0xf0] sm:$0xff]
        %v335 = vld [vmem:[#allocation5 + $0xf8] sm:$0xff]
        %v336 = vld [vmem:[#allocation5 + $0x100] sm:$0xff]
        %v337 = vld [vmem:[#allocation5 + $0x108] sm:$0xff]
        %v338 = vld [vmem:[#allocation5 + $0x110] sm:$0xff]
        %v339 = vld [vmem:[#allocation5 + $0x118] sm:$0xff]
        %v340 = vld [vmem:[#allocation5 + $0x120] sm:$0xff]
        %v341 = vld [vmem:[#allocation5 + $0x128] sm:$0xff]
        %v342 = vld [vmem:[#allocation5 + $0x130] sm:$0xff]
        %v343 = vld [vmem:[#allocation5 + $0x138] sm:$0xff]
        %v344 = vld [vmem:[#allocation5 + $0x140] sm:$0xff]
        %v345 = vld [vmem:[#allocation5 + $0x148] sm:$0xff]
        %v346 = vld [vmem:[#allocation5 + $0x150] sm:$0xff]
        %v347 = vld [vmem:[#allocation5 + $0x158] sm:$0xff]
        %v348 = vld [vmem:[#allocation5 + $0x160] sm:$0xff]
        %v349 = vld [vmem:[#allocation5 + $0x168] sm:$0xff]
        %v350 = vld [vmem:[#allocation5 + $0x170] sm:$0xff]
        %v351 = vld [vmem:[#allocation5 + $0x178] sm:$0xff]
        %v352 = vld [vmem:[#allocation5 + $0x180] sm:$0xff]
        %v353 = vld [vmem:[#allocation5 + $0x188] sm:$0xff]
        %v354 = vld [vmem:[#allocation5 + $0x190] sm:$0xff]
        %v355 = vld [vmem:[#allocation5 + $0x198] sm:$0xff]
        %v356 = vld [vmem:[#allocation5 + $0x1a0] sm:$0xff]
        %v357 = vld [vmem:[#allocation5 + $0x1a8] sm:$0xff]
        %v358 = vld [vmem:[#allocation5 + $0x1b0] sm:$0xff]
        %v359 = vld [vmem:[#allocation5 + $0x1b8] sm:$0xff]
        %v360 = vld [vmem:[#allocation5 + $0x1c0] sm:$0xff]
        %v361 = vld [vmem:[#allocation5 + $0x1c8] sm:$0xff]
        %v362 = vld [vmem:[#allocation5 + $0x1d0] sm:$0xff]
        %v363 = vld [vmem:[#allocation5 + $0x1d8] sm:$0xff]
        %v364 = vld [vmem:[#allocation5 + $0x1e0] sm:$0xff]
        %v365 = vld [vmem:[#allocation5 + $0x1e8] sm:$0xff]
        %v366 = vld [vmem:[#allocation5 + $0x1f0] sm:$0xff]
        %v367 = vld [vmem:[#allocation5 + $0x1f8] sm:$0xff]
        %v368 = vld [vmem:[#allocation5 + $0x200] sm:$0xff]
        %v369 = vld [vmem:[#allocation5 + $0x208] sm:$0xff]
        %v370 = vld [vmem:[#allocation5 + $0x210] sm:$0xff]
        %v371 = vld [vmem:[#allocation5 + $0x218] sm:$0xff]
        %v372 = vld [vmem:[#allocation5 + $0x220] sm:$0xff]
        %v373 = vld [vmem:[#allocation5 + $0x228] sm:$0xff]
        %v374 = vld [vmem:[#allocation5 + $0x230] sm:$0xff]
        %v375 = vld [vmem:[#allocation5 + $0x238] sm:$0xff]
        %v376 = vld [vmem:[#allocation5 + $0x240] sm:$0xff]
        %v377 = vld [vmem:[#allocation5 + $0x248] sm:$0xff]
        %v378 = vld [vmem:[#allocation5 + $0x250] sm:$0xff]
        %v379 = vld [vmem:[#allocation5 + $0x258] sm:$0xff]
        %v380 = vld [vmem:[#allocation5 + $0x260] sm:$0xff]
        %v381 = vld [vmem:[#allocation5 + $0x268] sm:$0xff]
        %v382 = vld [vmem:[#allocation5 + $0x270] sm:$0xff]
        %v383 = vld [vmem:[#allocation5 + $0x278] sm:$0xff]
        %v384 = vld [vmem:[#allocation5 + $0x280] sm:$0xff]
        %v385 = vld [vmem:[#allocation5 + $0x288] sm:$0xff]
        %v386 = vld [vmem:[#allocation5 + $0x290] sm:$0xff]
        %v387 = vld [vmem:[#allocation5 + $0x298] sm:$0xff]
        %v388 = vld [vmem:[#allocation5 + $0x2a0] sm:$0xff]
        %v389 = vld [vmem:[#allocation5 + $0x2a8] sm:$0xff]
        %v390 = vld [vmem:[#allocation5 + $0x2b0] sm:$0xff]
        %v391 = vld [vmem:[#allocation5 + $0x2b8] sm:$0xff]
        %v392 = vld [vmem:[#allocation5 + $0x2c0] sm:$0xff]
        %v393 = vld [vmem:[#allocation5 + $0x2c8] sm:$0xff]
        %v394 = vld [vmem:[#allocation5 + $0x2d0] sm:$0xff]
        %v395 = vld [vmem:[#allocation5 + $0x2d8] sm:$0xff]
        %v396 = vld [vmem:[#allocation5 + $0x2e0] sm:$0xff]
        %v397 = vld [vmem:[#allocation5 + $0x2e8] sm:$0xff]
        %v398 = vld [vmem:[#allocation5 + $0x2f0] sm:$0xff]
        %v399 = vld [vmem:[#allocation5 + $0x2f8] sm:$0xff]
        %v400 = vld [vmem:[#allocation5 + $0x300] sm:$0xff]
        %v401 = vld [vmem:[#allocation5 + $0x308] sm:$0xff]
        %v402 = vld [vmem:[#allocation5 + $0x310] sm:$0xff]
        %v403 = vld [vmem:[#allocation5 + $0x318] sm:$0xff]
        %v404 = vld [vmem:[#allocation5 + $0x320] sm:$0xff]
        %v405 = vld [vmem:[#allocation5 + $0x328] sm:$0xff]
        %v406 = vld [vmem:[#allocation5 + $0x330] sm:$0xff]
        %v407 = vld [vmem:[#allocation5 + $0x338] sm:$0xff]
        %v408 = vld [vmem:[#allocation5 + $0x340] sm:$0xff]
        %v409 = vld [vmem:[#allocation5 + $0x348] sm:$0xff]
        %v410 = vld [vmem:[#allocation5 + $0x350] sm:$0xff]
        %v411 = vld [vmem:[#allocation5 + $0x358] sm:$0xff]
        %v412 = vld [vmem:[#allocation5 + $0x360] sm:$0xff]
        %v413 = vld [vmem:[#allocation5 + $0x368] sm:$0xff]
        %v414 = vld [vmem:[#allocation5 + $0x370] sm:$0xff]
        %v415 = vld [vmem:[#allocation5 + $0x378] sm:$0xff]
        %v416 = vld [vmem:[#allocation5 + $0x380] sm:$0xff]
        %v417 = vld [vmem:[#allocation5 + $0x388] sm:$0xff]
        %v418 = vld [vmem:[#allocation5 + $0x390] sm:$0xff]
        %v419 = vld [vmem:[#allocation5 + $0x398] sm:$0xff]
        %v420 = vld [vmem:[#allocation5 + $0x3a0] sm:$0xff]
        %v421 = vld [vmem:[#allocation5 + $0x3a8] sm:$0xff]
        %v422 = vld [vmem:[#allocation5 + $0x3b0] sm:$0xff]
        %v423 = vld [vmem:[#allocation5 + $0x3b8] sm:$0xff]
        %v424 = vld [vmem:[#allocation5 + $0x3c0] sm:$0xff]
        %v425 = vld [vmem:[#allocation5 + $0x3c8] sm:$0xff]
        %v426 = vld [vmem:[#allocation5 + $0x3d0] sm:$0xff]
        %v427 = vld [vmem:[#allocation5 + $0x3d8] sm:$0xff]
        %v428 = vld [vmem:[#allocation5 + $0x3e0] sm:$0xff]
        %v429 = vld [vmem:[#allocation5 + $0x3e8] sm:$0xff]
        %v430 = vld [vmem:[#allocation5 + $0x3f0] sm:$0xff]
        %v431 = vld [vmem:[#allocation5 + $0x3f8] sm:$0xff]
        %v432 = vld [vmem:[#allocation7] sm:$0xf]
        %v434 = vlaneseq
        %v435 = vshrl.u32 %v434, 7
        %v436 = vsub.s32 0, %v435
        %v437 = vrot.slane %v432, %v436
        %v438 = vlaneseq
        %v439 = vshrl.u32 %v438, 7
        %v440 = vsub.s32 1, %v439
        %v441 = vrot.slane %v432, %v440
        %v442 = vlaneseq
        %v443 = vshrl.u32 %v442, 7
        %v444 = vsub.s32 2, %v443
        %v445 = vrot.slane %v432, %v444
        %v446 = vlaneseq
        %v447 = vshrl.u32 %v446, 7
        %v448 = vsub.s32 3, %v447
        %v449 = vrot.slane %v432, %v448
        %454 = vmatprep.subr.mxu0 %v365
        %455 = vmatpush1.msra.mxu0 %v364
        %456 = vmatprep.subr.mxu0 %v361
        %457 = vmatpush1.msra.mxu0 %v360
        %458 = vmatprep.subr.mxu0 %v357
        %459 = vmatpush1.msra.mxu0 %v356
        %460 = vmatprep.subr.mxu0 %v353
        %461 = vmatpush1.msra.mxu0 %v352
        %462 = vmatprep.subr.mxu0 %v349
        %463 = vmatpush1.msra.mxu0 %v348
        %464 = vmatprep.subr.mxu0 %v345
        %465 = vmatpush1.msra.mxu0 %v344
        %466 = vmatprep.subr.mxu0 %v341
        %467 = vmatpush1.msra.mxu0 %v340
        %468 = vmatprep.subr.mxu0 %v337
        %469 = vmatpush1.msra.mxu0 %v336
        %470 = vmatprep.subr.mxu0 %v333
        %471 = vmatpush1.msra.mxu0 %v332
        %472 = vmatprep.subr.mxu0 %v329
        %473 = vmatpush1.msra.mxu0 %v328
        %474 = vmatprep.subr.mxu0 %v325
        %475 = vmatpush1.msra.mxu0 %v324
        %476 = vmatprep.subr.mxu0 %v321
        %477 = vmatpush1.msra.mxu0 %v320
        %478 = vmatprep.subr.mxu0 %v317
        %479 = vmatpush1.msra.mxu0 %v316
        %480 = vmatprep.subr.mxu0 %v313
        %481 = vmatpush1.msra.mxu0 %v312
        %482 = vmatprep.subr.mxu0 %v309
        %483 = vmatpush1.msra.mxu0 %v308
        %484 = vmatprep.subr.mxu0 %v305
        %485 = vmatpush1.msra.mxu0 %v304
        %486 = vmatprep.subr.mxu0 %v429
        %487 = vmatpush2.msra.mxu0 %v428
        %488 = vmatprep.subr.mxu0 %v425
        %489 = vmatpush2.msra.mxu0 %v424
        %490 = vmatprep.subr.mxu0 %v421
        %491 = vmatpush2.msra.mxu0 %v420
        %492 = vmatprep.subr.mxu0 %v417
        %493 = vmatpush2.msra.mxu0 %v416
        %494 = vmatprep.subr.mxu0 %v413
        %495 = vmatpush2.msra.mxu0 %v412
        %496 = vmatprep.subr.mxu0 %v409
        %497 = vmatpush2.msra.mxu0 %v408
        %498 = vmatprep.subr.mxu0 %v405
        %499 = vmatpush2.msra.mxu0 %v404
        %500 = vmatprep.subr.mxu0 %v401
        %501 = vmatpush2.msra.mxu0 %v400
        %502 = vmatprep.subr.mxu0 %v397
        %503 = vmatpush2.msra.mxu0 %v396
        %504 = vmatprep.subr.mxu0 %v393
        %505 = vmatpush2.msra.mxu0 %v392
        %506 = vmatprep.subr.mxu0 %v389
        %507 = vmatpush2.msra.mxu0 %v388
        %508 = vmatprep.subr.mxu0 %v385
        %509 = vmatpush2.msra.mxu0 %v384
        %510 = vmatprep.subr.mxu0 %v381
        %511 = vmatpush2.msra.mxu0 %v380
        %512 = vmatprep.subr.mxu0 %v377
        %513 = vmatpush2.msra.mxu0 %v376
        %514 = vmatprep.subr.mxu0 %v373
        %515 = vmatpush2.msra.mxu0 %v372
        %516 = vmatprep.subr.mxu0 %v369
        %517 = vmatpush2.msra.mxu0 %v368
        %518 = vmatprep.mubr.f32.mxu0 %v289
        %519 = vmatmul.mubr.f32.gmra.mxu0 %v288
        %v520 = vpop.f32.mrf.mxu0
        %v521 = vadd.f32 %v437, %v520
        %v522 = vpop.f32.mrf.mxu0
        %v523 = vadd.f32 %v441, %v522
        %524 = vmatprep.mubr.f32.mxu0 %v291
        %525 = vmatmul.mubr.f32.gmra.mxu0 %v290
        %v526 = vpop.f32.mrf.mxu0
        %v527 = vadd.f32 %v437, %v526
        %v528 = vpop.f32.mrf.mxu0
        %v529 = vadd.f32 %v441, %v528
        %530 = vmatprep.mubr.f32.mxu0 %v293
        %531 = vmatmul.mubr.f32.gmra.mxu0 %v292
        %v532 = vpop.f32.mrf.mxu0
        %v533 = vadd.f32 %v437, %v532
        %v534 = vpop.f32.mrf.mxu0
        %v535 = vadd.f32 %v441, %v534
        %536 = vmatprep.mubr.f32.mxu0 %v295
        %537 = vmatmul.mubr.f32.gmra.mxu0 %v294
        %v538 = vpop.f32.mrf.mxu0
        %v539 = vadd.f32 %v437, %v538
        %v540 = vpop.f32.mrf.mxu0
        %v541 = vadd.f32 %v441, %v540
        %542 = vmatprep.mubr.f32.mxu0 %v297
        %543 = vmatmul.mubr.f32.gmra.mxu0 %v296
        %v544 = vpop.f32.mrf.mxu0
        %v545 = vadd.f32 %v437, %v544
        %v546 = vpop.f32.mrf.mxu0
        %v547 = vadd.f32 %v441, %v546
        %548 = vmatprep.mubr.f32.mxu0 %v299
        %549 = vmatmul.mubr.f32.gmra.mxu0 %v298
        %v550 = vpop.f32.mrf.mxu0
        %v551 = vadd.f32 %v437, %v550
        %v552 = vpop.f32.mrf.mxu0
        %v553 = vadd.f32 %v441, %v552
        %554 = vmatprep.mubr.f32.mxu0 %v301
        %555 = vmatmul.mubr.f32.gmra.mxu0 %v300
        %v556 = vpop.f32.mrf.mxu0
        %v557 = vadd.f32 %v437, %v556
        %v558 = vpop.f32.mrf.mxu0
        %v559 = vadd.f32 %v441, %v558
        %560 = vmatprep.mubr.f32.mxu0 %v303
        %561 = vmatmul.mubr.f32.gmra.mxu0 %v302
        %v562 = vpop.f32.mrf.mxu0
        %v563 = vadd.f32 %v437, %v562
        %v564 = vpop.f32.mrf.mxu0
        %v565 = vadd.f32 %v441, %v564
        %566 = vdwg.mxu0
        %567 = vmatprep.subr.mxu0 %v367
        %568 = vmatpush1.msra.mxu0 %v366
        %569 = vmatprep.subr.mxu0 %v363
        %570 = vmatpush1.msra.mxu0 %v362
        %571 = vmatprep.subr.mxu0 %v359
        %572 = vmatpush1.msra.mxu0 %v358
        %573 = vmatprep.subr.mxu0 %v355
        %574 = vmatpush1.msra.mxu0 %v354
        %575 = vmatprep.subr.mxu0 %v351
        %576 = vmatpush1.msra.mxu0 %v350
        %577 = vmatprep.subr.mxu0 %v347
        %578 = vmatpush1.msra.mxu0 %v346
        %579 = vmatprep.subr.mxu0 %v343
        %580 = vmatpush1.msra.mxu0 %v342
        %581 = vmatprep.subr.mxu0 %v339
        %582 = vmatpush1.msra.mxu0 %v338
        %583 = vmatprep.subr.mxu0 %v335
        %584 = vmatpush1.msra.mxu0 %v334
        %585 = vmatprep.subr.mxu0 %v331
        %586 = vmatpush1.msra.mxu0 %v330
        %587 = vmatprep.subr.mxu0 %v327
        %588 = vmatpush1.msra.mxu0 %v326
        %589 = vmatprep.subr.mxu0 %v323
        %590 = vmatpush1.msra.mxu0 %v322
        %591 = vmatprep.subr.mxu0 %v319
        %592 = vmatpush1.msra.mxu0 %v318
        %593 = vmatprep.subr.mxu0 %v315
        %594 = vmatpush1.msra.mxu0 %v314
        %595 = vmatprep.subr.mxu0 %v311
        %596 = vmatpush1.msra.mxu0 %v310
        %597 = vmatprep.subr.mxu0 %v307
        %598 = vmatpush1.msra.mxu0 %v306
        %599 = vmatprep.subr.mxu0 %v431
        %600 = vmatpush2.msra.mxu0 %v430
        %601 = vmatprep.subr.mxu0 %v427
        %602 = vmatpush2.msra.mxu0 %v426
        %603 = vmatprep.subr.mxu0 %v423
        %604 = vmatpush2.msra.mxu0 %v422
        %605 = vmatprep.subr.mxu0 %v419
        %606 = vmatpush2.msra.mxu0 %v418
        %607 = vmatprep.subr.mxu0 %v415
        %608 = vmatpush2.msra.mxu0 %v414
        %609 = vmatprep.subr.mxu0 %v411
        %610 = vmatpush2.msra.mxu0 %v410
        %611 = vmatprep.subr.mxu0 %v407
        %612 = vmatpush2.msra.mxu0 %v406
        %613 = vmatprep.subr.mxu0 %v403
        %614 = vmatpush2.msra.mxu0 %v402
        %615 = vmatprep.subr.mxu0 %v399
        %616 = vmatpush2.msra.mxu0 %v398
        %617 = vmatprep.subr.mxu0 %v395
        %618 = vmatpush2.msra.mxu0 %v394
        %619 = vmatprep.subr.mxu0 %v391
        %620 = vmatpush2.msra.mxu0 %v390
        %621 = vmatprep.subr.mxu0 %v387
        %622 = vmatpush2.msra.mxu0 %v386
        %623 = vmatprep.subr.mxu0 %v383
        %624 = vmatpush2.msra.mxu0 %v382
        %625 = vmatprep.subr.mxu0 %v379
        %626 = vmatpush2.msra.mxu0 %v378
        %627 = vmatprep.subr.mxu0 %v375
        %628 = vmatpush2.msra.mxu0 %v374
        %629 = vmatprep.subr.mxu0 %v371
        %630 = vmatpush2.msra.mxu0 %v370
        %631 = vmatprep.mubr.f32.mxu0 %v289
        %632 = vmatmul.mubr.f32.gmra.mxu0 %v288
        %v633 = vpop.f32.mrf.mxu0
        %v634 = vadd.f32 %v445, %v633
        %v635 = vpop.f32.mrf.mxu0
        %v636 = vadd.f32 %v449, %v635
        %637 = vmatprep.mubr.f32.mxu0 %v291
        %638 = vmatmul.mubr.f32.gmra.mxu0 %v290
        %v639 = vpop.f32.mrf.mxu0
        %v640 = vadd.f32 %v445, %v639
        %v641 = vpop.f32.mrf.mxu0
        %v642 = vadd.f32 %v449, %v641
        %643 = vmatprep.mubr.f32.mxu0 %v293
        %644 = vmatmul.mubr.f32.gmra.mxu0 %v292
        %v645 = vpop.f32.mrf.mxu0
        %v646 = vadd.f32 %v445, %v645
        %v647 = vpop.f32.mrf.mxu0
        %v648 = vadd.f32 %v449, %v647
        %649 = vmatprep.mubr.f32.mxu0 %v295
        %650 = vmatmul.mubr.f32.gmra.mxu0 %v294
        %v651 = vpop.f32.mrf.mxu0
        %v652 = vadd.f32 %v445, %v651
        %v653 = vpop.f32.mrf.mxu0
        %v654 = vadd.f32 %v449, %v653
        %655 = vmatprep.mubr.f32.mxu0 %v297
        %656 = vmatmul.mubr.f32.gmra.mxu0 %v296
        %v657 = vpop.f32.mrf.mxu0
        %v658 = vadd.f32 %v445, %v657
        %v659 = vpop.f32.mrf.mxu0
        %v660 = vadd.f32 %v449, %v659
        %661 = vmatprep.mubr.f32.mxu0 %v299
        %662 = vmatmul.mubr.f32.gmra.mxu0 %v298
        %v663 = vpop.f32.mrf.mxu0
        %v664 = vadd.f32 %v445, %v663
        %v665 = vpop.f32.mrf.mxu0
        %v666 = vadd.f32 %v449, %v665
        %667 = vmatprep.mubr.f32.mxu0 %v301
        %668 = vmatmul.mubr.f32.gmra.mxu0 %v300
        %v669 = vpop.f32.mrf.mxu0
        %v670 = vadd.f32 %v445, %v669
        %v671 = vpop.f32.mrf.mxu0
        %v672 = vadd.f32 %v449, %v671
        %673 = vmatprep.mubr.f32.mxu0 %v303
        %674 = vmatmul.mubr.f32.gmra.mxu0 %v302
        %v675 = vpop.f32.mrf.mxu0
        %v676 = vadd.f32 %v445, %v675
        %v677 = vpop.f32.mrf.mxu0
        %v678 = vadd.f32 %v449, %v677
        %679 = vdwg.mxu0
        %v680 = vmax.f32 %v521, 0.0
        %v681 = vmax.f32 %v523, 0.0
        %v682 = vmax.f32 %v634, 0.0
        %v683 = vmax.f32 %v636, 0.0
        %v684 = vmax.f32 %v527, 0.0
        %v685 = vmax.f32 %v529, 0.0
        %v686 = vmax.f32 %v640, 0.0
        %v687 = vmax.f32 %v642, 0.0
        %v688 = vmax.f32 %v533, 0.0
        %v689 = vmax.f32 %v535, 0.0
        %v690 = vmax.f32 %v646, 0.0
        %v691 = vmax.f32 %v648, 0.0
        %v692 = vmax.f32 %v539, 0.0
        %v693 = vmax.f32 %v541, 0.0
        %v694 = vmax.f32 %v652, 0.0
        %v695 = vmax.f32 %v654, 0.0
        %v696 = vmax.f32 %v545, 0.0
        %v697 = vmax.f32 %v547, 0.0
        %v698 = vmax.f32 %v658, 0.0
        %v699 = vmax.f32 %v660, 0.0
        %v700 = vmax.f32 %v551, 0.0
        %v701 = vmax.f32 %v553, 0.0
        %v702 = vmax.f32 %v664, 0.0
        %v703 = vmax.f32 %v666, 0.0
        %v704 = vmax.f32 %v557, 0.0
        %v705 = vmax.f32 %v559, 0.0
        %v706 = vmax.f32 %v670, 0.0
        %v707 = vmax.f32 %v672, 0.0
        %v708 = vmax.f32 %v563, 0.0
        %v709 = vmax.f32 %v565, 0.0
        %v710 = vmax.f32 %v676, 0.0
        %v711 = vmax.f32 %v678, 0.0
        %v712 = vld [vmem:[#allocation8] sm:$0xff]
        %v713 = vld [vmem:[#allocation8 + $0x8] sm:$0xff]
        %v714 = vld [vmem:[#allocation8 + $0x10] sm:$0xff]
        %v715 = vld [vmem:[#allocation8 + $0x18] sm:$0xff]
        %v716 = vld [vmem:[#allocation8 + $0x20] sm:$0xff]
        %v717 = vld [vmem:[#allocation8 + $0x28] sm:$0xff]
        %v718 = vld [vmem:[#allocation8 + $0x30] sm:$0xff]
        %v719 = vld [vmem:[#allocation8 + $0x38] sm:$0xff]
        %v720 = vld [vmem:[#allocation8 + $0x40] sm:$0xff]
        %v721 = vld [vmem:[#allocation8 + $0x48] sm:$0xff]
        %v722 = vld [vmem:[#allocation8 + $0x50] sm:$0xff]
        %v723 = vld [vmem:[#allocation8 + $0x58] sm:$0xff]
        %v724 = vld [vmem:[#allocation8 + $0x60] sm:$0xff]
        %v725 = vld [vmem:[#allocation8 + $0x68] sm:$0xff]
        %v726 = vld [vmem:[#allocation8 + $0x70] sm:$0xff]
        %v727 = vld [vmem:[#allocation8 + $0x78] sm:$0xff]
        %v728 = vld [vmem:[#allocation8 + $0x80] sm:$0xff]
        %v729 = vld [vmem:[#allocation8 + $0x88] sm:$0xff]
        %v730 = vld [vmem:[#allocation8 + $0x90] sm:$0xff]
        %v731 = vld [vmem:[#allocation8 + $0x98] sm:$0xff]
        %v732 = vld [vmem:[#allocation8 + $0xa0] sm:$0xff]
        %v733 = vld [vmem:[#allocation8 + $0xa8] sm:$0xff]
        %v734 = vld [vmem:[#allocation8 + $0xb0] sm:$0xff]
        %v735 = vld [vmem:[#allocation8 + $0xb8] sm:$0xff]
        %v736 = vld [vmem:[#allocation8 + $0xc0] sm:$0xff]
        %v737 = vld [vmem:[#allocation8 + $0xc8] sm:$0xff]
        %v738 = vld [vmem:[#allocation8 + $0xd0] sm:$0xff]
        %v739 = vld [vmem:[#allocation8 + $0xd8] sm:$0xff]
        %v740 = vld [vmem:[#allocation8 + $0xe0] sm:$0xff]
        %v741 = vld [vmem:[#allocation8 + $0xe8] sm:$0xff]
        %v742 = vld [vmem:[#allocation8 + $0xf0] sm:$0xff]
        %v743 = vld [vmem:[#allocation8 + $0xf8] sm:$0xff]
        %v744 = vld [vmem:[#allocation8 + $0x100] sm:$0xff]
        %v745 = vld [vmem:[#allocation8 + $0x108] sm:$0xff]
        %v746 = vld [vmem:[#allocation8 + $0x110] sm:$0xff]
        %v747 = vld [vmem:[#allocation8 + $0x118] sm:$0xff]
        %v748 = vld [vmem:[#allocation8 + $0x120] sm:$0xff]
        %v749 = vld [vmem:[#allocation8 + $0x128] sm:$0xff]
        %v750 = vld [vmem:[#allocation8 + $0x130] sm:$0xff]
        %v751 = vld [vmem:[#allocation8 + $0x138] sm:$0xff]
        %v752 = vld [vmem:[#allocation8 + $0x140] sm:$0xff]
        %v753 = vld [vmem:[#allocation8 + $0x148] sm:$0xff]
        %v754 = vld [vmem:[#allocation8 + $0x150] sm:$0xff]
        %v755 = vld [vmem:[#allocation8 + $0x158] sm:$0xff]
        %v756 = vld [vmem:[#allocation8 + $0x160] sm:$0xff]
        %v757 = vld [vmem:[#allocation8 + $0x168] sm:$0xff]
        %v758 = vld [vmem:[#allocation8 + $0x170] sm:$0xff]
        %v759 = vld [vmem:[#allocation8 + $0x178] sm:$0xff]
        %v760 = vld [vmem:[#allocation8 + $0x180] sm:$0xff]
        %v761 = vld [vmem:[#allocation8 + $0x188] sm:$0xff]
        %v762 = vld [vmem:[#allocation8 + $0x190] sm:$0xff]
        %v763 = vld [vmem:[#allocation8 + $0x198] sm:$0xff]
        %v764 = vld [vmem:[#allocation8 + $0x1a0] sm:$0xff]
        %v765 = vld [vmem:[#allocation8 + $0x1a8] sm:$0xff]
        %v766 = vld [vmem:[#allocation8 + $0x1b0] sm:$0xff]
        %v767 = vld [vmem:[#allocation8 + $0x1b8] sm:$0xff]
        %v768 = vld [vmem:[#allocation8 + $0x1c0] sm:$0xff]
        %v769 = vld [vmem:[#allocation8 + $0x1c8] sm:$0xff]
        %v770 = vld [vmem:[#allocation8 + $0x1d0] sm:$0xff]
        %v771 = vld [vmem:[#allocation8 + $0x1d8] sm:$0xff]
        %v772 = vld [vmem:[#allocation8 + $0x1e0] sm:$0xff]
        %v773 = vld [vmem:[#allocation8 + $0x1e8] sm:$0xff]
        %v774 = vld [vmem:[#allocation8 + $0x1f0] sm:$0xff]
        %v775 = vld [vmem:[#allocation8 + $0x1f8] sm:$0xff]
        %v776 = vld [vmem:[%s4] sm:$0x1]
        %v778 = vlaneseq
        %v779 = vshrl.u32 %v778, 7
        %v780 = vsub.s32 0, %v779
        %v781 = vrot.slane %v776, %v780
        %783 = vmatprep.subr.mxu0 0.0
        %784 = vmatpush1.msra.mxu0 %v727
        %785 = vmatprep.subr.mxu0 0.0
        %786 = vmatpush1.msra.mxu0 %v726
        %787 = vmatprep.subr.mxu0 0.0
        %788 = vmatpush1.msra.mxu0 %v725
        %789 = vmatprep.subr.mxu0 0.0
        %790 = vmatpush1.msra.mxu0 %v724
        %791 = vmatprep.subr.mxu0 0.0
        %792 = vmatpush1.msra.mxu0 %v723
        %793 = vmatprep.subr.mxu0 0.0
        %794 = vmatpush1.msra.mxu0 %v722
        %795 = vmatprep.subr.mxu0 0.0
        %796 = vmatpush1.msra.mxu0 %v721
        %797 = vmatprep.subr.mxu0 0.0
        %798 = vmatpush1.msra.mxu0 %v720
        %799 = vmatprep.subr.mxu0 0.0
        %800 = vmatpush1.msra.mxu0 %v719
        %801 = vmatprep.subr.mxu0 0.0
        %802 = vmatpush1.msra.mxu0 %v718
        %803 = vmatprep.subr.mxu0 0.0
        %804 = vmatpush1.msra.mxu0 %v717
        %805 = vmatprep.subr.mxu0 0.0
        %806 = vmatpush1.msra.mxu0 %v716
        %807 = vmatprep.subr.mxu0 0.0
        %808 = vmatpush1.msra.mxu0 %v715
        %809 = vmatprep.subr.mxu0 0.0
        %810 = vmatpush1.msra.mxu0 %v714
        %811 = vmatprep.subr.mxu0 0.0
        %812 = vmatpush1.msra.mxu0 %v713
        %813 = vmatprep.subr.mxu0 0.0
        %814 = vmatpush1.msra.mxu0 %v712
        %815 = vmatprep.subr.mxu0 0.0
        %816 = vmatpush2.msra.mxu0 %v743
        %817 = vmatprep.subr.mxu0 0.0
        %818 = vmatpush2.msra.mxu0 %v742
        %819 = vmatprep.subr.mxu0 0.0
        %820 = vmatpush2.msra.mxu0 %v741
        %821 = vmatprep.subr.mxu0 0.0
        %822 = vmatpush2.msra.mxu0 %v740
        %823 = vmatprep.subr.mxu0 0.0
        %824 = vmatpush2.msra.mxu0 %v739
        %825 = vmatprep.subr.mxu0 0.0
        %826 = vmatpush2.msra.mxu0 %v738
        %827 = vmatprep.subr.mxu0 0.0
        %828 = vmatpush2.msra.mxu0 %v737
        %829 = vmatprep.subr.mxu0 0.0
        %830 = vmatpush2.msra.mxu0 %v736
        %831 = vmatprep.subr.mxu0 0.0
        %832 = vmatpush2.msra.mxu0 %v735
        %833 = vmatprep.subr.mxu0 0.0
        %834 = vmatpush2.msra.mxu0 %v734
        %835 = vmatprep.subr.mxu0 0.0
        %836 = vmatpush2.msra.mxu0 %v733
        %837 = vmatprep.subr.mxu0 0.0
        %838 = vmatpush2.msra.mxu0 %v732
        %839 = vmatprep.subr.mxu0 0.0
        %840 = vmatpush2.msra.mxu0 %v731
        %841 = vmatprep.subr.mxu0 0.0
        %842 = vmatpush2.msra.mxu0 %v730
        %843 = vmatprep.subr.mxu0 0.0
        %844 = vmatpush2.msra.mxu0 %v729
        %845 = vmatprep.subr.mxu0 0.0
        %846 = vmatpush2.msra.mxu0 %v728
        %847 = vmatprep.mubr.f32.mxu0 %v681
        %848 = vmatmul.mubr.f32.gmra.mxu0 %v680
        %v849 = vpop.f32.mrf.mxu0
        %v850 = vadd.f32 %v781, %v849
        %v851 = vpop.f32.mrf.mxu0
        %852 = vmatprep.mubr.f32.mxu0 %v685
        %853 = vmatmul.mubr.f32.gmra.mxu0 %v684
        %v854 = vpop.f32.mrf.mxu0
        %v855 = vadd.f32 %v781, %v854
        %v856 = vpop.f32.mrf.mxu0
        %857 = vmatprep.mubr.f32.mxu0 %v689
        %858 = vmatmul.mubr.f32.gmra.mxu0 %v688
        %v859 = vpop.f32.mrf.mxu0
        %v860 = vadd.f32 %v781, %v859
        %v861 = vpop.f32.mrf.mxu0
        %862 = vmatprep.mubr.f32.mxu0 %v693
        %863 = vmatmul.mubr.f32.gmra.mxu0 %v692
        %v864 = vpop.f32.mrf.mxu0
        %v865 = vadd.f32 %v781, %v864
        %v866 = vpop.f32.mrf.mxu0
        %867 = vmatprep.mubr.f32.mxu0 %v697
        %868 = vmatmul.mubr.f32.gmra.mxu0 %v696
        %v869 = vpop.f32.mrf.mxu0
        %v870 = vadd.f32 %v781, %v869
        %v871 = vpop.f32.mrf.mxu0
        %872 = vmatprep.mubr.f32.mxu0 %v701
        %873 = vmatmul.mubr.f32.gmra.mxu0 %v700
        %v874 = vpop.f32.mrf.mxu0
        %v875 = vadd.f32 %v781, %v874
        %v876 = vpop.f32.mrf.mxu0
        %877 = vmatprep.mubr.f32.mxu0 %v705
        %878 = vmatmul.mubr.f32.gmra.mxu0 %v704
        %v879 = vpop.f32.mrf.mxu0
        %v880 = vadd.f32 %v781, %v879
        %v881 = vpop.f32.mrf.mxu0
        %882 = vmatprep.mubr.f32.mxu0 %v709
        %883 = vmatmul.mubr.f32.gmra.mxu0 %v708
        %v884 = vpop.f32.mrf.mxu0
        %v885 = vadd.f32 %v781, %v884
        %v886 = vpop.f32.mrf.mxu0
        %887 = vdwg.mxu0
        %888 = vmatprep.subr.mxu0 0.0
        %889 = vmatpush1.msra.mxu0 %v759
        %890 = vmatprep.subr.mxu0 0.0
        %891 = vmatpush1.msra.mxu0 %v758
        %892 = vmatprep.subr.mxu0 0.0
        %893 = vmatpush1.msra.mxu0 %v757
        %894 = vmatprep.subr.mxu0 0.0
        %895 = vmatpush1.msra.mxu0 %v756
        %896 = vmatprep.subr.mxu0 0.0
        %897 = vmatpush1.msra.mxu0 %v755
        %898 = vmatprep.subr.mxu0 0.0
        %899 = vmatpush1.msra.mxu0 %v754
        %900 = vmatprep.subr.mxu0 0.0
        %901 = vmatpush1.msra.mxu0 %v753
        %902 = vmatprep.subr.mxu0 0.0
        %903 = vmatpush1.msra.mxu0 %v752
        %904 = vmatprep.subr.mxu0 0.0
        %905 = vmatpush1.msra.mxu0 %v751
        %906 = vmatprep.subr.mxu0 0.0
        %907 = vmatpush1.msra.mxu0 %v750
        %908 = vmatprep.subr.mxu0 0.0
        %909 = vmatpush1.msra.mxu0 %v749
        %910 = vmatprep.subr.mxu0 0.0
        %911 = vmatpush1.msra.mxu0 %v748
        %912 = vmatprep.subr.mxu0 0.0
        %913 = vmatpush1.msra.mxu0 %v747
        %914 = vmatprep.subr.mxu0 0.0
        %915 = vmatpush1.msra.mxu0 %v746
        %916 = vmatprep.subr.mxu0 0.0
        %917 = vmatpush1.msra.mxu0 %v745
        %918 = vmatprep.subr.mxu0 0.0
        %919 = vmatpush1.msra.mxu0 %v744
        %920 = vmatprep.subr.mxu0 0.0
        %921 = vmatpush2.msra.mxu0 %v775
        %922 = vmatprep.subr.mxu0 0.0
        %923 = vmatpush2.msra.mxu0 %v774
        %924 = vmatprep.subr.mxu0 0.0
        %925 = vmatpush2.msra.mxu0 %v773
        %926 = vmatprep.subr.mxu0 0.0
        %927 = vmatpush2.msra.mxu0 %v772
        %928 = vmatprep.subr.mxu0 0.0
        %929 = vmatpush2.msra.mxu0 %v771
        %930 = vmatprep.subr.mxu0 0.0
        %931 = vmatpush2.msra.mxu0 %v770
        %932 = vmatprep.subr.mxu0 0.0
        %933 = vmatpush2.msra.mxu0 %v769
        %934 = vmatprep.subr.mxu0 0.0
        %935 = vmatpush2.msra.mxu0 %v768
        %936 = vmatprep.subr.mxu0 0.0
        %937 = vmatpush2.msra.mxu0 %v767
        %938 = vmatprep.subr.mxu0 0.0
        %939 = vmatpush2.msra.mxu0 %v766
        %940 = vmatprep.subr.mxu0 0.0
        %941 = vmatpush2.msra.mxu0 %v765
        %942 = vmatprep.subr.mxu0 0.0
        %943 = vmatpush2.msra.mxu0 %v764
        %944 = vmatprep.subr.mxu0 0.0
        %945 = vmatpush2.msra.mxu0 %v763
        %946 = vmatprep.subr.mxu0 0.0
        %947 = vmatpush2.msra.mxu0 %v762
        %948 = vmatprep.subr.mxu0 0.0
        %949 = vmatpush2.msra.mxu0 %v761
        %950 = vmatprep.subr.mxu0 0.0
        %951 = vmatpush2.msra.mxu0 %v760
        %952 = vmatprep.mubr.f32.mxu0 %v683
        %953 = vmatmul.mubr.f32.gmra.mxu0 %v682
        %v954 = vpop.f32.mrf.mxu0
        %v955 = vadd.f32 %v850, %v954
        %v956 = vpop.f32.mrf.mxu0
        %957 = vmatprep.mubr.f32.mxu0 %v687
        %958 = vmatmul.mubr.f32.gmra.mxu0 %v686
        %v959 = vpop.f32.mrf.mxu0
        %v960 = vadd.f32 %v855, %v959
        %v961 = vpop.f32.mrf.mxu0
        %962 = vmatprep.mubr.f32.mxu0 %v691
        %963 = vmatmul.mubr.f32.gmra.mxu0 %v690
        %v964 = vpop.f32.mrf.mxu0
        %v965 = vadd.f32 %v860, %v964
        %v966 = vpop.f32.mrf.mxu0
        %967 = vmatprep.mubr.f32.mxu0 %v695
        %968 = vmatmul.mubr.f32.gmra.mxu0 %v694
        %v969 = vpop.f32.mrf.mxu0
        %v970 = vadd.f32 %v865, %v969
        %v971 = vpop.f32.mrf.mxu0
        %972 = vmatprep.mubr.f32.mxu0 %v699
        %973 = vmatmul.mubr.f32.gmra.mxu0 %v698
        %v974 = vpop.f32.mrf.mxu0
        %v975 = vadd.f32 %v870, %v974
        %v976 = vpop.f32.mrf.mxu0
        %977 = vmatprep.mubr.f32.mxu0 %v703
        %978 = vmatmul.mubr.f32.gmra.mxu0 %v702
        %v979 = vpop.f32.mrf.mxu0
        %v980 = vadd.f32 %v875, %v979
        %v981 = vpop.f32.mrf.mxu0
        %982 = vmatprep.mubr.f32.mxu0 %v707
        %983 = vmatmul.mubr.f32.gmra.mxu0 %v706
        %v984 = vpop.f32.mrf.mxu0
        %v985 = vadd.f32 %v880, %v984
        %v986 = vpop.f32.mrf.mxu0
        %987 = vmatprep.mubr.f32.mxu0 %v711
        %988 = vmatmul.mubr.f32.gmra.mxu0 %v710
        %v989 = vpop.f32.mrf.mxu0
        %v990 = vadd.f32 %v885, %v989
        %v991 = vpop.f32.mrf.mxu0
        %992 = vdwg.mxu0
        %v993 = vmax.f32 %v955, 0.0
        %v994 = vmax.f32 %v960, 0.0
        %v995 = vmax.f32 %v965, 0.0
        %v996 = vmax.f32 %v970, 0.0
        %v997 = vmax.f32 %v975, 0.0
        %v998 = vmax.f32 %v980, 0.0
        %v999 = vmax.f32 %v985, 0.0
        %v1000 = vmax.f32 %v990, 0.0
        %1001 = vst [vmem:[%s285] sm:$0xff] %v993
        %1002 = vst [vmem:[%s285 + $0x8] sm:$0xff] %v994
        %1003 = vst [vmem:[%s285 + $0x10] sm:$0xff] %v995
        %1004 = vst [vmem:[%s285 + $0x18] sm:$0xff] %v996
        %1005 = vst [vmem:[%s285 + $0x20] sm:$0xff] %v997
        %1006 = vst [vmem:[%s285 + $0x28] sm:$0xff] %v998
        %1007 = vst [vmem:[%s285 + $0x30] sm:$0xff] %v999
        %1008 = vst [vmem:[%s285 + $0x38] sm:$0xff] %v1000
        %s1009 = sand.u32 %s142, 1
        %s1010 = scalar_lea.sflag [#allocation4], %s1009
        %s1011 = sand.u32 %s142, 1
        %s1012 = smul.addr %s1011, 64
        %s1013 = scalar_lea.vmem [#allocation10], %s1012
        // Predicated region
        $region57: #{tpu_custom_call.1} parent=39 // pred_check
          %p1014 = pneg %p152
        $region58: #{tpu_custom_call.1} parent=39 // pred_check_branch
          %1016 = sbr.rel (%p1014) target = $region60
        $region59: #{tpu_custom_call.1} parent=39 // pred_region
          %s1017 = smul.u32 8, %s24
          %s1019 = ssub.s32 1024, 1024
          %1020 = vsyncadd %s1010, %s1019
          %s1021 = smul.addr %s1017, 128
          %s1022 = scalar_lea.hbm %s5, %s1021
          %s1023 = sshll.u32 %s1013, 4
          %s1024 = int_to_ptr.vmem [resolvable:$true] %s1023
          %1029 = dma.vmem_to_hbm [thread:$0]  %s1024, 1024, %s1022, %s1010, 128, 128, 8
        $region60: #{tpu_custom_call.1} parent=39 // pred_fallthru
          _
      $region40: #{tpu_custom_call.1} parent=5 // pred_fallthru
        _
      %p1030 = scmp.le.s32.totalorder 2, %s19
      // Predicated region
      $region61: #{tpu_custom_call.1} parent=5 // pred_check
        %p1031 = pneg %p1030
      $region62: #{tpu_custom_call.1} parent=5 // pred_check_branch
        %1033 = sbr.rel (%p1031) target = $region64
      $region63: #{tpu_custom_call.1} parent=5 // pred_region
        %s1034 = ssub.s32 %s19, 2
        // Predicated region
        $region65: #{tpu_custom_call.1} parent=63 // pred_check
          %p1035 = pneg %p158
        $region66: #{tpu_custom_call.1} parent=63 // pred_check_branch
          %1037 = sbr.rel (%p1035) target = $region68
        $region67: #{tpu_custom_call.1} parent=63 // pred_region
          %s1038 = sand.u32 %s143, 1
          %s1039 = scalar_lea.sflag [#allocation4], %s1038
          %s1040 = sand.u32 %s143, 1
          %s1041 = smul.addr %s1040, 64
          %s1042 = scalar_lea.vmem [#allocation10], %s1041
          %1043 = dma.done %s1039, 1024
        $region68: #{tpu_custom_call.1} parent=63 // pred_fallthru
          _
      $region64: #{tpu_custom_call.1} parent=5 // pred_fallthru
        _
    $region6: #{tpu_custom_call.1} parent=1 // loop_footer
      %s23 = sadd.s32 1, %s19
    $region7: #{tpu_custom_call.1} parent=1 // loop_footer_branch
      %18 = sbr.rel target = $region3
    $region8: #{tpu_custom_call.1} parent=1 // loop_exit
      _
    %1044 = vsyncpa [#allocation3], 1
    %s1045 = scalar_lea.sflag [#allocation3], 1
    %1046 = vsyncpa %s1045, 1
    %1047 = vsyncpa [#allocation6], 1
    %1048 = vsyncpa [#allocation9], 1
    %1049 = vsyncpa [#allocation4], 1
    %s1050 = scalar_lea.sflag [#allocation4], 1
    %1051 = vsyncpa %s1050, 1

</llo_original>
